<compile_context>
chip_gen: v6e
topology: v6e:2x2x1
jax: 0.10.0
libtpu: 0.0.40
codegen_flags: <defaults>
</compile_context>

<pallas_src>
import jax
import jax.numpy as jnp
from jax.experimental import pallas as pl
from jax.experimental.pallas import tpu as pltpu


def _round_up(x, m):
    return ((x + m - 1) // m) * m


def _cdiv(a, b):
    return -(-a // b)


def _fused_decoder_kernel(x_ref, w_ref, b_ref, out_ref):
    # Single MXU matmul against the pre-fused (H, Op) weight; f32 accumulation.
    y = jnp.dot(x_ref[...], w_ref[...], preferred_element_type=jnp.float32)
    out_ref[...] = (y + b_ref[...]).astype(out_ref.dtype)


def mock_decoder_forward(x, w1, b1, w2, b2, *,
                         max_rows_per_block=1024, min_pallas_rows=0):
    """MockDecoder forward: y = (x @ W1^T + b1) @ W2^T + b2.

    Weights in PyTorch nn.Linear layout: w1 (H, H), w2 (O, H), b1 (1, H)/(H,),
    b2 (1, O)/(O,).  Returns (B, O) in x.dtype.
    """
    B, H = x.shape
    O = w2.shape[0]
    hp = jax.lax.Precision.HIGHEST

    # --- One-time affine fusion of the two bias layers (exact algebra). ---
    w_eff = jnp.dot(w1.T, w2.T, precision=hp)                                  # (H, O)
    b_eff = jnp.dot(b1.reshape(1, -1), w2.T, precision=hp) + b2.reshape(1, -1)  # (1, O)

    # Tiny-batch fast path: pallas launch + slice overhead exceeds the work.
    if B < min_pallas_rows:
        return jnp.dot(x, w_eff, precision=hp) + b_eff

    # --- Lane-dense padding of the OUTPUT dim only (constants, cheap). ---
    Op = _round_up(O, 128)
    if Op != O:
        w_eff = jnp.pad(w_eff, ((0, 0), (0, Op - O)))
        b_eff = jnp.pad(b_eff, ((0, 0), (0, Op - O)))

    # --- Batch blocking: big blocks, minimal padding, >=2 steps when possible. ---
    Bp8 = _round_up(B, 8)
    n_blocks = _cdiv(Bp8, max_rows_per_block)
    if n_blocks == 1 and Bp8 >= 16:
        n_blocks = 2  # let the "parallel" axis shard across v7x's 2 TensorCores
    BM = _round_up(_cdiv(Bp8, n_blocks), 8)
    Bp = n_blocks * BM
    x_p = jnp.pad(x, ((0, Bp - B), (0, 0))) if Bp != B else x

    # Advisory cost hint from the TRUE shapes (not padded).
    itemsize = jnp.dtype(x.dtype).itemsize
    cost = pl.CostEstimate(
        flops=2 * B * H * O,
        transcendentals=0,
        bytes_accessed=(B * H + H * O + O + B * O) * itemsize,
    )

    vmem = pltpu.MemorySpace.VMEM
    out_p = pl.pallas_call(
        _fused_decoder_kernel,
        out_shape=jax.ShapeDtypeStruct((Bp, Op), x.dtype),
        grid=(n_blocks,),
        in_specs=[
            # x tile: (BM, H); H == full dim, so no lane padding of activations.
            pl.BlockSpec((BM, H), lambda i: (i, 0), memory_space=vmem),
            # Fused weight, VMEM-resident across the batch grid.
            pl.BlockSpec((H, Op), lambda i: (0, 0), memory_space=vmem),
            # Fused bias, VMEM-resident.
            pl.BlockSpec((1, Op), lambda i: (0, 0), memory_space=vmem),
        ],
        out_specs=pl.BlockSpec((BM, Op), lambda i: (i, 0), memory_space=vmem),
        compiler_params=pltpu.CompilerParams(
            dimension_semantics=("parallel",),
        ),
        cost_estimate=cost,
    )(x_p, w_eff, b_eff)

    # Slice batch/lane padding back off outside the kernel.
    return out_p[:B, :O]


def init_params(key, hidden_size=50, output_size=10, dtype=jnp.float32):
    """Deterministic init matching nn.Linear shapes (Kaiming-uniform-like bounds)."""
    k1, k2, k3, k4 = jax.random.split(key, 4)
    bound = 1.0 / (hidden_size ** 0.5)
    w1 = jax.random.uniform(k1, (hidden_size, hidden_size), dtype, -bound, bound)
    b1 = jax.random.uniform(k2, (1, hidden_size), dtype, -bound, bound)
    w2 = jax.random.uniform(k3, (output_size, hidden_size), dtype, -bound, bound)
    b2 = jax.random.uniform(k4, (1, output_size), dtype, -bound, bound)
    return w1, b1, w2, b2


def _reference(x, w1, b1, w2, b2):
    # Faithful two-layer PyTorch semantics, computed at highest XLA precision.
    hp = jax.lax.Precision.HIGHEST
    h = jnp.dot(x, w1.T, precision=hp) + b1
    return jnp.dot(h, w2.T, precision=hp) + b2


if __name__ == "__main__":
    hidden_size, output_size, batch = 50, 10, 8

    key = jax.random.PRNGKey(0)
    kx, kp, kx2 = jax.random.split(key, 3)
    x = jax.random.normal(kx, (batch, hidden_size), dtype=jnp.float32)
    w1, b1, w2, b2 = init_params(kp, hidden_size, output_size)

    forward = jax.jit(mock_decoder_forward)

    # Small-batch case (single grid step).
    y = jax.block_until_ready(forward(x, w1, b1, w2, b2))
    y_ref = _reference(x, w1, b1, w2, b2)
    assert y.shape == (batch, output_size)
    # Tolerance covers TPU matmul pass precision + the affine-fusion reassociation.
    assert jnp.allclose(y, y_ref, atol=5e-3, rtol=5e-3), float(jnp.max(jnp.abs(y - y_ref)))

    # Larger batch: exercises batch padding (300 -> 304) and a 2-step parallel grid.
    x2 = jax.random.normal(kx2, (300, hidden_size), dtype=jnp.float32)
    y2 = jax.block_until_ready(forward(x2, w1, b1, w2, b2))
    y2_ref = _reference(x2, w1, b1, w2, b2)
    assert y2.shape == (300, output_size)
    assert jnp.allclose(y2, y2_ref, atol=5e-3, rtol=5e-3), float(jnp.max(jnp.abs(y2 - y2_ref)))

    print("KERNEL_OK")
</pallas_src>

<mosaic_0001>
module attributes {stable_mosaic.version = 11 : i64} {
  func.func @_fused_decoder_kernel(%arg0: i32, %arg1: memref<8x50xf32, #tpu.memory_space<vmem>>, %arg2: memref<50x128xf32, #tpu.memory_space<vmem>>, %arg3: memref<1x128xf32, #tpu.memory_space<vmem>>, %arg4: memref<8x128xf32, #tpu.memory_space<vmem>>) attributes {dimension_semantics = [#tpu.dimension_semantics<parallel>], iteration_bounds = array<i64: 1>, scalar_prefetch = 0 : i64, scratch_operands = 0 : i64, tpu.core_type = #tpu.core_type<tc>, window_params = [{transform_indices = @transform_0, window_bounds = array<i64: 8, 50>}, {pipeline_mode = #tpu.pipeline_mode<synchronous>, transform_indices = @transform_1, window_bounds = array<i64: 50, 128>}, {pipeline_mode = #tpu.pipeline_mode<synchronous>, transform_indices = @transform_2, window_bounds = array<i64: 1, 128>}, {transform_indices = @transform_3, window_bounds = array<i64: 8, 128>}]} {
    %c0 = arith.constant 0 : index
    %c0_0 = arith.constant 0 : index
    %0 = vector.load %arg1[%c0, %c0_0] : memref<8x50xf32, #tpu.memory_space<vmem>>, vector<8x50xf32>
    %c0_1 = arith.constant 0 : index
    %c0_2 = arith.constant 0 : index
    %1 = vector.load %arg2[%c0_1, %c0_2] : memref<50x128xf32, #tpu.memory_space<vmem>>, vector<50x128xf32>
    %cst = arith.constant dense<0.000000e+00> : vector<8x128xf32>
    %2 = tpu.matmul %0, %1, %cst {dimension_numbers = #tpu.dot_dimension_numbers<[1], [0], [0], [1], [0, 0, 1, 1], [], []>} : vector<8x50xf32>, vector<50x128xf32>, vector<8x128xf32> -> vector<8x128xf32>
    %c0_3 = arith.constant 0 : index
    %c0_4 = arith.constant 0 : index
    %3 = vector.load %arg3[%c0_3, %c0_4] : memref<1x128xf32, #tpu.memory_space<vmem>>, vector<1x128xf32>
    %4 = vector.broadcast %3 : vector<1x128xf32> to vector<8x128xf32>
    %5 = arith.addf %2, %4 : vector<8x128xf32>
    %c0_5 = arith.constant 0 : index
    %c0_6 = arith.constant 0 : index
    %6 = vector.load %arg4[%c0_5, %c0_6] : memref<8x128xf32, #tpu.memory_space<vmem>>, vector<8x128xf32>
    tpu.vector_store %arg4[%c0_5, %c0_6], %5 {strides = array<i32>} : memref<8x128xf32, #tpu.memory_space<vmem>>, vector<8x128xf32>,
    return
  }
  func.func @transform_0(%arg0: i32) -> (i32, i32) {
    %c0_i32 = arith.constant 0 : i32
    %c0_i32_0 = arith.constant 0 : i32
    return %arg0, %c0_i32 : i32, i32
  }
  func.func @transform_1(%arg0: i32) -> (i32, i32) {
    %c0_i32 = arith.constant 0 : i32
    %c0_i32_0 = arith.constant 0 : i32
    %c0_i32_1 = arith.constant 0 : i32
    return %c0_i32, %c0_i32_0 : i32, i32
  }
  func.func @transform_2(%arg0: i32) -> (i32, i32) {
    %c0_i32 = arith.constant 0 : i32
    %c0_i32_0 = arith.constant 0 : i32
    %c0_i32_1 = arith.constant 0 : i32
    return %c0_i32, %c0_i32_0 : i32, i32
  }
  func.func @transform_3(%arg0: i32) -> (i32, i32) {
    %c0_i32 = arith.constant 0 : i32
    %c0_i32_0 = arith.constant 0 : i32
    return %arg0, %c0_i32 : i32, i32
  }
}

</mosaic_0001>

<llo_original>
// kernel: mock_decoder_forward.1
$region0: #{mock_decoder_forward.1}
  #allocation0 [shape = 'u32[]', space=smem, size = 0x4, offset = 0x4, fixed_abs, tag = 'smem constant byte address 0x4 - core index']
  #allocation1 [shape = 'u32[144,128]{1,0:T(1,128)}', space=vmem, size = 0x12000, scoped, tag = 'internal scratch']
  %s0 = inlined_call_operand.vmem [shape: f32[8,50], index: 0, kind: input, shape index: {}]
  %s1 = inlined_call_operand.vmem [shape: f32[50,128], index: 1, kind: input, shape index: {}]
  %s2 = inlined_call_operand.vmem [shape: f32[1,128], index: 2, kind: input, shape index: {}]
  %s3 = inlined_call_operand.hbm [shape: f32[8,128], index: 3, kind: output, shape index: {}]
  %s4 = sld [smem:[#allocation0]]
  $region22: #{mock_decoder_forward.1} parent=0
    _
  %s6 = ssub.s32 1, %s4
  %s7 = scalar_select 0, %s6, %s4
  $region1: #{mock_decoder_forward.1} parent=0
    #allocation2 [shape = 'u8[4096]{0}', space=vmem, size = 0x1000, scoped, tag = 'output window, operand 0, single buffered']
    #allocation3 [shape = 's32[1]{0}', space=sflag, size = 0x4, scoped, tag = 'scoped memory for mock_decoder_forward.1']
    %8 = vsyncpa [#allocation3], 0
    // Predicated region
    $region2: #{mock_decoder_forward.1} parent=1 // pred_check
      _
    $region3: #{mock_decoder_forward.1} parent=1 // pred_check_branch
      %10 = sbr.rel (0) target = $region5
    $region4: #{mock_decoder_forward.1} parent=1 // pred_region
      _
    $region5: #{mock_decoder_forward.1} parent=1 // pred_fallthru
      _
    // Predicated region
    $region6: #{mock_decoder_forward.1} parent=1 // pred_check
      _
    $region7: #{mock_decoder_forward.1} parent=1 // pred_check_branch
      %12 = sbr.rel (0) target = $region9
    $region8: #{mock_decoder_forward.1} parent=1 // pred_region
      _
    $region9: #{mock_decoder_forward.1} parent=1 // pred_fallthru
      _
    // Predicated region
    $region10: #{mock_decoder_forward.1} parent=1 // pred_check
      _
    $region11: #{mock_decoder_forward.1} parent=1 // pred_check_branch
      %14 = sbr.rel (0) target = $region13
    $region12: #{mock_decoder_forward.1} parent=1 // pred_region
      _
    $region13: #{mock_decoder_forward.1} parent=1 // pred_fallthru
      _
    %v15 = vld [vmem:[%s0] sm:$0xff]
    %v16 = vld [vmem:[%s1] sm:$0xff]
    %v17 = vld [vmem:[%s1 + $0x8] sm:$0xff]
    %v18 = vld [vmem:[%s1 + $0x10] sm:$0xff]
    %v19 = vld [vmem:[%s1 + $0x18] sm:$0xff]
    %v20 = vld [vmem:[%s1 + $0x20] sm:$0xff]
    %v21 = vld [vmem:[%s1 + $0x28] sm:$0xff]
    %v22 = vld [vmem:[%s1 + $0x30] sm:$0x3]
    %v23 = vld [vmem:[%s2] sm:$0x1]
    %v25 = vlaneseq
    %v26 = vshrl.u32 %v25, 7
    %v27 = vsub.s32 0, %v26
    %v28 = vrot.slane %v23, %v27
    %vm30 = vcmask 408576
    %v32 = vsel %vm30, %v15, 0
    %vm34 = vcmask 1041408
    %v36 = vsel %vm34, %v22, 0
    %38 = vmatprep.subr.mxu0 0.0
    %39 = vmatpush1.msra.mxu0 0.0
    %40 = vmatprep.subr.mxu0 0.0
    %41 = vmatpush1.msra.mxu0 0.0
    %42 = vmatprep.subr.mxu0 0.0
    %43 = vmatpush1.msra.mxu0 0.0
    %44 = vmatprep.subr.mxu0 0.0
    %45 = vmatpush1.msra.mxu0 0.0
    %46 = vmatprep.subr.mxu0 0.0
    %47 = vmatpush1.msra.mxu0 0.0
    %48 = vmatprep.subr.mxu0 0.0
    %49 = vmatpush1.msra.mxu0 0.0
    %50 = vmatprep.subr.mxu0 0.0
    %51 = vmatpush1.msra.mxu0 0.0
    %52 = vmatprep.subr.mxu0 0.0
    %53 = vmatpush1.msra.mxu0 0.0
    %54 = vmatprep.subr.mxu0 0.0
    %55 = vmatpush1.msra.mxu0 0.0
    %56 = vmatprep.subr.mxu0 0.0
    %57 = vmatpush1.msra.mxu0 %v36
    %58 = vmatprep.subr.mxu0 0.0
    %59 = vmatpush1.msra.mxu0 %v21
    %60 = vmatprep.subr.mxu0 0.0
    %61 = vmatpush1.msra.mxu0 %v20
    %62 = vmatprep.subr.mxu0 0.0
    %63 = vmatpush1.msra.mxu0 %v19
    %64 = vmatprep.subr.mxu0 0.0
    %65 = vmatpush1.msra.mxu0 %v18
    %66 = vmatprep.subr.mxu0 0.0
    %67 = vmatpush1.msra.mxu0 %v17
    %68 = vmatprep.subr.mxu0 0.0
    %69 = vmatpush1.msra.mxu0 %v16
    %70 = vmatprep.subr.mxu0 0.0
    %71 = vmatpush2.msra.mxu0 0.0
    %72 = vmatprep.subr.mxu0 0.0
    %73 = vmatpush2.msra.mxu0 0.0
    %74 = vmatprep.subr.mxu0 0.0
    %75 = vmatpush2.msra.mxu0 0.0
    %76 = vmatprep.subr.mxu0 0.0
    %77 = vmatpush2.msra.mxu0 0.0
    %78 = vmatprep.subr.mxu0 0.0
    %79 = vmatpush2.msra.mxu0 0.0
    %80 = vmatprep.subr.mxu0 0.0
    %81 = vmatpush2.msra.mxu0 0.0
    %82 = vmatprep.subr.mxu0 0.0
    %83 = vmatpush2.msra.mxu0 0.0
    %84 = vmatprep.subr.mxu0 0.0
    %85 = vmatpush2.msra.mxu0 0.0
    %86 = vmatprep.subr.mxu0 0.0
    %87 = vmatpush2.msra.mxu0 0.0
    %88 = vmatprep.subr.mxu0 0.0
    %89 = vmatpush2.msra.mxu0 0.0
    %90 = vmatprep.subr.mxu0 0.0
    %91 = vmatpush2.msra.mxu0 0.0
    %92 = vmatprep.subr.mxu0 0.0
    %93 = vmatpush2.msra.mxu0 0.0
    %94 = vmatprep.subr.mxu0 0.0
    %95 = vmatpush2.msra.mxu0 0.0
    %96 = vmatprep.subr.mxu0 0.0
    %97 = vmatpush2.msra.mxu0 0.0
    %98 = vmatprep.subr.mxu0 0.0
    %99 = vmatpush2.msra.mxu0 0.0
    %100 = vmatprep.subr.mxu0 0.0
    %101 = vmatpush2.msra.mxu0 0.0
    %102 = vmatprep.mubr.f32.mxu0 0.0
    %103 = vmatmul.mubr.f32.gmra.mxu0 %v32
    %v104 = vpop.f32.mrf.mxu0
    %v105 = vadd.f32 %v28, %v104
    %v106 = vpop.f32.mrf.mxu0
    %107 = vdwg.mxu0
    %108 = vst [vmem:[#allocation2] sm:$0xff] %v105
    // Predicated region
    $region14: #{mock_decoder_forward.1} parent=1 // pred_check
      _
    $region15: #{mock_decoder_forward.1} parent=1 // pred_check_branch
      %110 = sbr.rel (0) target = $region17
    $region16: #{mock_decoder_forward.1} parent=1 // pred_region
      %s112 = ssub.s32 128, 128
      %113 = vsyncadd [#allocation3], %s112
      %s115 = sshll.u32 [#allocation2], 4
      %s116 = int_to_ptr.vmem [resolvable:$true] %s115
      %118 = dma.vmem_to_hbm [thread:$0]  %s116, 128, %s3, [#allocation3]
    $region17: #{mock_decoder_forward.1} parent=1 // pred_fallthru
      _
    // Predicated region
    $region18: #{mock_decoder_forward.1} parent=1 // pred_check
      _
    $region19: #{mock_decoder_forward.1} parent=1 // pred_check_branch
      %120 = sbr.rel (0) target = $region21
    $region20: #{mock_decoder_forward.1} parent=1 // pred_region
      %121 = dma.done [#allocation3], 128
    $region21: #{mock_decoder_forward.1} parent=1 // pred_fallthru
      _
    %122 = vsyncpa [#allocation3], 1

</llo_original>
